<compile_context>
chip_gen: v7x
topology: tpu7x:2x2x1
jax: 0.10.0
libtpu: 0.0.40
codegen_flags: <defaults>
</compile_context>

<pallas_src>
import jax
import jax.numpy as jnp
from jax import lax
from jax.experimental import pallas as pl
from jax.experimental.pallas import tpu as pltpu


# Shapes of the 6 pooling parameters, as in MyPool.__init__ (N_in, N_out).
_POOL_SHAPES = [(196, 120), (120, 100), (100, 80), (80, 70), (70, 60), (60, 50)]
_LANE = 128
_NEG_INF = -1e30   # softmax pad fill: exp(pad - max) underflows to exactly 0


def _choose_tb(batch):
    """Largest per-step batch tile <= 16 that divides `batch`, while keeping
    >= 2 grid steps whenever batch >= 2 (so a 'parallel' grid axis can be
    sharded across v7x's two TensorCores)."""
    if batch <= 1:
        return 1
    for tb in range(min(batch // 2, 16), 0, -1):
        if batch % tb == 0:
            return tb
    return 1


def _my_pool_kernel(pool_ref, patch_ref, out_ref):
    # pool_ref : (TB, N_in, N_pad)  bf16 (pad columns = -1e30)
    # patch_ref: (TB, N_in, D)      f32
    # out_ref  : (TB, D, N_pad)     f32   (lane-dense: N_pad multiple of 128)
    w = pool_ref[...].astype(jnp.float32)
    x = patch_ref[...].astype(jnp.float32)

    # Softmax over the (padded) N_out axis = lanes.  Pad columns get weight 0.
    m = jnp.max(w, axis=-1, keepdims=True)
    e = jnp.exp(w - m)
    a = e / jnp.sum(e, axis=-1, keepdims=True)            # (TB, N_in, N_pad)

    # out_T[b, d, o] = sum_i x[b, i, d] * a[b, i, o]  (contract over N_in)
    # N_pad (multiple of 128) sits on the MXU-output / store lane axis.
    out_t = jnp.einsum("bid,bio->bdo", x, a,
                       preferred_element_type=jnp.float32)
    out_ref[...] = out_t.astype(out_ref.dtype)


def my_pool_forward(pool_padded, patch, n_out):
    """pool_padded: (B, N_in, N_pad) bf16/f32 (pad cols -1e30),
       patch: (B, N_in, D) f32  ->  (B, n_out, D) f32."""
    B, N_in, N_pad = pool_padded.shape
    Bp, N_in_p, D = patch.shape
    assert B == Bp and N_in == N_in_p and N_pad % _LANE == 0

    tb = _choose_tb(B)
    grid = (B // tb,)

    out_t = pl.pallas_call(
        _my_pool_kernel,
        out_shape=jax.ShapeDtypeStruct((B, D, N_pad), patch.dtype),
        grid_spec=pltpu.PrefetchScalarGridSpec(
            num_scalar_prefetch=0,
            grid=grid,
            in_specs=[
                pl.BlockSpec((tb, N_in, N_pad), lambda b: (b, 0, 0)),
                pl.BlockSpec((tb, N_in, D), lambda b: (b, 0, 0)),
            ],
            out_specs=pl.BlockSpec((tb, D, N_pad), lambda b: (b, 0, 0)),
        ),
        compiler_params=pltpu.CompilerParams(
            dimension_semantics=("parallel",)),
    )(pool_padded, patch)

    # Layout plumbing back to the PyTorch output layout: (B, n_out, D).
    return jnp.swapaxes(out_t, 1, 2)[:, :n_out, :]


class MyPoolJax:
    """MyPool re-implemented for JAX/Pallas.

    Parameters are initialized uniform [0, 1) (like nn.init.uniform_), then
    stored padded to 128 output columns (pad = -1e30, which receives exactly
    zero softmax weight) and in bfloat16 to halve the dominant HBM stream.
    All kernel-internal math (softmax, matmul accumulation) is float32.
    """

    def __init__(self, batch_size, key, param_dtype=jnp.bfloat16):
        self.batch_size = batch_size
        self.n_outs = [n_out for _, n_out in _POOL_SHAPES]
        keys = jax.random.split(key, len(_POOL_SHAPES))
        self.pools = []
        for k, (n_in, n_out) in zip(keys, _POOL_SHAPES):
            n_pad = -(-n_out // _LANE) * _LANE
            p = jax.random.uniform(k, (batch_size, n_in, n_out),
                                   dtype=jnp.float32).astype(param_dtype)
            pad = jnp.full((batch_size, n_in, n_pad - n_out), _NEG_INF,
                           dtype=param_dtype)
            self.pools.append(jnp.concatenate([p, pad], axis=-1))

    def pool_f32(self, layer_idx):
        """Unpadded f32 view of the stored pool parameter (for references)."""
        n_out = self.n_outs[layer_idx]
        return self.pools[layer_idx][:, :, :n_out].astype(jnp.float32)

    def __call__(self, patch, layer_idx):
        return my_pool_forward(self.pools[layer_idx], patch,
                               self.n_outs[layer_idx])


def _reference(pool_f32, patch):
    # Plain-JAX reference of the PyTorch forward (same stored parameter values).
    a = jax.nn.softmax(jnp.swapaxes(pool_f32, 1, 2), axis=1)   # (B, N_out, N_in)
    return jnp.einsum("boi,bid->bod", a, patch)


if __name__ == "__main__":
    key = jax.random.PRNGKey(0)
    k_param, k_patch = jax.random.split(key)

    batch_size = 2
    hidden = 32
    module = MyPoolJax(batch_size, k_param)

    ok = True
    for layer_idx in range(len(_POOL_SHAPES)):
        n_in, n_out = _POOL_SHAPES[layer_idx]
        patch = jax.random.uniform(
            jax.random.fold_in(k_patch, layer_idx),
            (batch_size, n_in, hidden), dtype=jnp.float32)

        out = jax.block_until_ready(module(patch, layer_idx))
        ref = _reference(module.pool_f32(layer_idx), patch)

        if out.shape != (batch_size, n_out, hidden):
            ok = False
        if not jnp.allclose(out, ref, atol=1e-4, rtol=1e-4):
            ok = False

    print("KERNEL_OK" if ok else "KERNEL_MISMATCH")
</pallas_src>

<mosaic_0001>
module attributes {stable_mosaic.version = 11 : i64} {
  func.func @_my_pool_kernel(%arg0: i32, %arg1: memref<1x196x128xbf16, #tpu.memory_space<vmem>>, %arg2: memref<1x196x32xf32, #tpu.memory_space<vmem>>, %arg3: memref<1x32x128xf32, #tpu.memory_space<vmem>>) attributes {dimension_semantics = [#tpu.dimension_semantics<parallel>], iteration_bounds = array<i64: 2>, scalar_prefetch = 0 : i64, scratch_operands = 0 : i64, tpu.core_type = #tpu.core_type<tc>, window_params = [{transform_indices = @transform_0, window_bounds = array<i64: 1, 196, 128>}, {transform_indices = @transform_1, window_bounds = array<i64: 1, 196, 32>}, {transform_indices = @transform_2, window_bounds = array<i64: 1, 32, 128>}]} {
    %c0 = arith.constant 0 : index
    %c0_0 = arith.constant 0 : index
    %c0_1 = arith.constant 0 : index
    %0 = vector.load %arg1[%c0, %c0_0, %c0_1] : memref<1x196x128xbf16, #tpu.memory_space<vmem>>, vector<1x196x128xbf16>
    %1 = arith.extf %0 : vector<1x196x128xbf16> to vector<1x196x128xf32>
    %c0_2 = arith.constant 0 : index
    %c0_3 = arith.constant 0 : index
    %c0_4 = arith.constant 0 : index
    %2 = vector.load %arg2[%c0_2, %c0_3, %c0_4] : memref<1x196x32xf32, #tpu.memory_space<vmem>>, vector<1x196x32xf32>
    %cst = arith.constant dense<0xFF800000> : vector<1x196xf32>
    %3 = vector.multi_reduction <maximumf>, %1, %cst [2] : vector<1x196x128xf32> to vector<1x196xf32>
    %4 = vector.shape_cast %3 : vector<1x196xf32> to vector<1x196x1xf32>
    %5 = vector.broadcast %4 : vector<1x196x1xf32> to vector<1x196x128xf32>
    %6 = arith.subf %1, %5 : vector<1x196x128xf32>
    %7 = math.exp %6 : vector<1x196x128xf32>
    %cst_5 = arith.constant dense<0.000000e+00> : vector<1x196xf32>
    %8 = vector.multi_reduction <add>, %7, %cst_5 [2] : vector<1x196x128xf32> to vector<1x196xf32>
    %9 = vector.shape_cast %8 : vector<1x196xf32> to vector<1x196x1xf32>
    %10 = vector.broadcast %9 : vector<1x196x1xf32> to vector<1x196x128xf32>
    %11 = arith.divf %7, %10 : vector<1x196x128xf32>
    "tpu.trace_start"() <{level = 10 : i32, message = "bid,bio->bdo"}> : () -> ()
    %cst_6 = arith.constant dense<0.000000e+00> : vector<1x32x128xf32>
    %12 = tpu.matmul %2, %11, %cst_6 {dimension_numbers = #tpu.dot_dimension_numbers<[1], [1], [2], [2], [0, 0, 0, 2, 1, 2], [0], [0]>} : vector<1x196x32xf32>, vector<1x196x128xf32>, vector<1x32x128xf32> -> vector<1x32x128xf32>
    "tpu.trace_stop"() : () -> ()
    %c0_7 = arith.constant 0 : index
    %c0_8 = arith.constant 0 : index
    %c0_9 = arith.constant 0 : index
    %13 = vector.load %arg3[%c0_7, %c0_8, %c0_9] : memref<1x32x128xf32, #tpu.memory_space<vmem>>, vector<1x32x128xf32>
    tpu.vector_store %arg3[%c0_7, %c0_8, %c0_9], %12 {strides = array<i32>} : memref<1x32x128xf32, #tpu.memory_space<vmem>>, vector<1x32x128xf32>,
    return
  }
  func.func @transform_0(%arg0: i32) -> (i32, i32, i32) {
    %c0_i32 = arith.constant 0 : i32
    %c0_i32_0 = arith.constant 0 : i32
    %c0_i32_1 = arith.constant 0 : i32
    return %arg0, %c0_i32, %c0_i32_0 : i32, i32, i32
  }
  func.func @transform_1(%arg0: i32) -> (i32, i32, i32) {
    %c0_i32 = arith.constant 0 : i32
    %c0_i32_0 = arith.constant 0 : i32
    %c0_i32_1 = arith.constant 0 : i32
    return %arg0, %c0_i32, %c0_i32_0 : i32, i32, i32
  }
  func.func @transform_2(%arg0: i32) -> (i32, i32, i32) {
    %c0_i32 = arith.constant 0 : i32
    %c0_i32_0 = arith.constant 0 : i32
    %c0_i32_1 = arith.constant 0 : i32
    return %arg0, %c0_i32, %c0_i32_0 : i32, i32, i32
  }
}

</mosaic_0001>

<llo_original>
// kernel: tpu_custom_call.1
$region0: #{tpu_custom_call.1}
  #allocation0 [shape = 'u32[]', space=smem, size = 0x4, offset = 0x4, fixed_abs, tag = 'smem constant byte address 0x4 - core index']
  #allocation1 [shape = 'u32[144,128]{1,0:T(1,128)}', space=vmem, size = 0x12000, scoped, tag = 'internal scratch']
  %s0 = inlined_call_operand.vmem [shape: bf16[2,196,128], index: 0, kind: input, shape index: {}]
  %s1 = inlined_call_operand.vmem [shape: f32[2,196,32], index: 1, kind: input, shape index: {}]
  %s2 = inlined_call_operand.hbm [shape: f32[2,32,128], index: 2, kind: output, shape index: {}]
  %s3 = sld [smem:[#allocation0]]
  $region41: #{tpu_custom_call.1} parent=0
    _
  %s5 = ssub.s32 1, %s3
  %s6 = scalar_select 0, %s5, %s3
  $region1: #{tpu_custom_call.1} parent=0
    #allocation2 [shape = 'u8[32768]{0}', space=vmem, size = 0x8000, scoped, tag = 'output window, operand 0']
    #allocation3 [shape = 's32[2]{0}', space=sflag, size = 0x8, scoped, tag = 'scoped memory for tpu_custom_call.1']
    %7 = vsyncpa [#allocation3], 0
    %s8 = scalar_lea.sflag [#allocation3], 1
    %9 = vsyncpa %s8, 0
    loop: start=0, step=1, limit=4
    $region2: #{tpu_custom_call.1} parent=1 // loop_pre_header
      _
    $region3: #{tpu_custom_call.1} parent=1 // loop_header
      %s11 = sphi 0, %s15
      %p12 = scmp.ge.s32.totalorder %s11, 4
      %s21 = sphi 0, %s23
      %s24 = sphi 0, %s21
      %s25 = sphi 0, %s24
      %s41 = sphi 0, %s25
      %s47 = sphi 0, %s49
      %s50 = sphi 0, %s47
      %s51 = sphi 0, %s50
      %s67 = sphi 0, %s51
      %s73 = sphi 0, %s75
      %s76 = sphi 0, %s73
      %s77 = sphi 0, %s76
      %s93 = sphi 0, %s77
    $region4: #{tpu_custom_call.1} parent=1 // loop_header_branch
      %14 = sbr.rel (%p12) target = $region8
    $region5: #{tpu_custom_call.1} parent=1 // loop_body
      %s16 = ssub.s32 %s11, 1
      %s17 = ssub.s32 %s11, 2
      %s18 = sadd.s32 %s11, 1
      %s19 = ssub.s32 %s11, %s18
      %p20 = scmp.eq.s32.totalorder %s19, 0
      %s22 = sadd.s32 %s21, 1
      %s23 = scalar_select %p20, %s21, %s22
      %p26 = pneg %p20
      %p27 = scmp.eq.s32.totalorder %s11, 1
      %p28 = por %p26, %p27
      %p29 = scmp.ne.s32.totalorder %s21, %s24
      %p30 = scmp.eq.s32.totalorder %s11, 0
      %p31 = por %p29, %p30
      %p32 = scmp.ne.s32.totalorder %s21, %s24
      %p33 = scmp.eq.s32.totalorder %s16, 1
      %p34 = por %p32, %p33
      %p35 = scmp.ne.s32.totalorder %s24, %s25
      %p36 = scmp.eq.s32.totalorder %s16, 0
      %p37 = por %p35, %p36
      %p38 = scmp.ne.s32.totalorder %s24, %s25
      %p39 = scmp.eq.s32.totalorder %s17, 1
      %p40 = por %p38, %p39
      %p42 = scmp.ne.s32.totalorder %s25, %s41
      %p43 = scmp.eq.s32.totalorder %s17, 0
      %p44 = por %p42, %p43
      %s45 = ssub.s32 %s11, %s18
      %p46 = scmp.eq.s32.totalorder %s45, 0
      %s48 = sadd.s32 %s47, 1
      %s49 = scalar_select %p46, %s47, %s48
      %p52 = pneg %p46
      %p53 = scmp.eq.s32.totalorder %s11, 1
      %p54 = por %p52, %p53
      %p55 = scmp.ne.s32.totalorder %s47, %s50
      %p56 = scmp.eq.s32.totalorder %s11, 0
      %p57 = por %p55, %p56
      %p58 = scmp.ne.s32.totalorder %s47, %s50
      %p59 = scmp.eq.s32.totalorder %s16, 1
      %p60 = por %p58, %p59
      %p61 = scmp.ne.s32.totalorder %s50, %s51
      %p62 = scmp.eq.s32.totalorder %s16, 0
      %p63 = por %p61, %p62
      %p64 = scmp.ne.s32.totalorder %s50, %s51
      %p65 = scmp.eq.s32.totalorder %s17, 1
      %p66 = por %p64, %p65
      %p68 = scmp.ne.s32.totalorder %s51, %s67
      %p69 = scmp.eq.s32.totalorder %s17, 0
      %p70 = por %p68, %p69
      %s71 = ssub.s32 %s11, %s18
      %p72 = scmp.eq.s32.totalorder %s71, 0
      %s74 = sadd.s32 %s73, 1
      %s75 = scalar_select %p72, %s73, %s74
      %p78 = pneg %p72
      %p79 = scmp.eq.s32.totalorder %s11, 1
      %p80 = por %p78, %p79
      %p81 = scmp.ne.s32.totalorder %s73, %s76
      %p82 = scmp.eq.s32.totalorder %s11, 0
      %p83 = por %p81, %p82
      %p84 = scmp.ne.s32.totalorder %s73, %s76
      %p85 = scmp.eq.s32.totalorder %s16, 1
      %p86 = por %p84, %p85
      %p87 = scmp.ne.s32.totalorder %s76, %s77
      %p88 = scmp.eq.s32.totalorder %s16, 0
      %p89 = por %p87, %p88
      %p90 = scmp.ne.s32.totalorder %s76, %s77
      %p91 = scmp.eq.s32.totalorder %s17, 1
      %p92 = por %p90, %p91
      %p94 = scmp.ne.s32.totalorder %s77, %s93
      %p95 = scmp.eq.s32.totalorder %s17, 0
      %p96 = por %p94, %p95
      %p97 = scmp.le.s32.totalorder 1, %s11
      %p98 = scmp.lt.s32.totalorder %s11, 3
      %p99 = pnand %p97, %p98
      %p100 = pneg %p99
      // Predicated region
      $region9: #{tpu_custom_call.1} parent=5 // pred_check
        _
      $region10: #{tpu_custom_call.1} parent=5 // pred_check_branch
        %102 = sbr.rel (%p99) target = $region12
      $region11: #{tpu_custom_call.1} parent=5 // pred_region
        %s103 = ssub.s32 %s11, 1
      $region12: #{tpu_custom_call.1} parent=5 // pred_fallthru
        _
      %p104 = scmp.lt.s32.totalorder %s11, 2
      // Predicated region
      $region13: #{tpu_custom_call.1} parent=5 // pred_check
        %p105 = pneg %p104
      $region14: #{tpu_custom_call.1} parent=5 // pred_check_branch
        %107 = sbr.rel (%p105) target = $region16
      $region15: #{tpu_custom_call.1} parent=5 // pred_region
        // Predicated region
        $region17: #{tpu_custom_call.1} parent=15 // pred_check
          %p108 = pneg %p31
        $region18: #{tpu_custom_call.1} parent=15 // pred_check_branch
          %110 = sbr.rel (%p108) target = $region20
        $region19: #{tpu_custom_call.1} parent=15 // pred_region
          %p111 = scmp.lt.s32.totalorder %s11, 1
          %s112 = scalar_select %p111, %s11, 1
          %s113 = smul.addr %s112, 25
          %s114 = smul.addr %s113, 4
          %s115 = scalar_lea.vmem %s0, %s114
        $region20: #{tpu_custom_call.1} parent=15 // pred_fallthru
          _
        // Predicated region
        $region21: #{tpu_custom_call.1} parent=15 // pred_check
          %p116 = pneg %p57
        $region22: #{tpu_custom_call.1} parent=15 // pred_check_branch
          %118 = sbr.rel (%p116) target = $region24
        $region23: #{tpu_custom_call.1} parent=15 // pred_region
          %p119 = scmp.lt.s32.totalorder %s11, 1
          %s120 = scalar_select %p119, %s11, 1
          %s121 = smul.addr %s120, 25
          %s122 = smul.addr %s121, 8
          %s123 = scalar_lea.vmem %s1, %s122
        $region24: #{tpu_custom_call.1} parent=15 // pred_fallthru
          _
      $region16: #{tpu_custom_call.1} parent=5 // pred_fallthru
        _
      %p124 = scmp.le.s32.totalorder 1, %s11
      %p125 = scmp.lt.s32.totalorder %s11, 3
      %p126 = pnand %p124, %p125
      %p127 = pneg %p126
      // Predicated region
      $region25: #{tpu_custom_call.1} parent=5 // pred_check
        _
      $region26: #{tpu_custom_call.1} parent=5 // pred_check_branch
        %129 = sbr.rel (%p126) target = $region28
      $region27: #{tpu_custom_call.1} parent=5 // pred_region
        %s130 = ssub.s32 %s11, 1
        %p131 = scmp.lt.s32.totalorder %s16, 1
        %s132 = scalar_select %p131, %s16, 1
        %s133 = smul.addr %s132, 25
        %s134 = smul.addr %s133, 4
        %s135 = scalar_lea.vmem %s0, %s134
        %p136 = pneg %p37
        %p137 = pneg %p34
        %p138 = scmp.lt.s32.totalorder %s16, 1
        %s139 = scalar_select %p138, %s16, 1
        %s140 = smul.addr %s139, 25
        %s141 = smul.addr %s140, 8
        %s142 = scalar_lea.vmem %s1, %s141
        %p143 = pneg %p63
        %p144 = pneg %p60
        %p145 = pneg %p89
        %p146 = pneg %p86
        %s147 = sand.u32 %s76, 1
        %s148 = scalar_lea.sflag [#allocation3], %s147
        %s149 = sand.u32 %s76, 1
        %s150 = smul.addr %s149, 32
        %s151 = scalar_lea.vmem [#allocation2], %s150
        %p152 = scmp.lt.s32.totalorder %s16, 1
        %s153 = scalar_select %p152, %s16, 1
        %s154 = smul.addr %s153, 25
        %s155 = smul.addr %s154, 4
        %s156 = scalar_lea.vmem %s0, %s155
        %p157 = scmp.lt.s32.totalorder %s16, 1
        %s158 = scalar_select %p157, %s16, 1
        %s159 = smul.addr %s158, 25
        %s160 = smul.addr %s159, 8
        %s161 = scalar_lea.vmem %s1, %s160
        %v162 = vld [vmem:[%s156] sm:$0xf]
        %v163 = vld [vmem:[%s156 + $0x4] sm:$0xf]
        %v164 = vld [vmem:[%s156 + $0x8] sm:$0xf]
        %v165 = vld [vmem:[%s156 + $0xc] sm:$0xf]
        %v166 = vld [vmem:[%s156 + $0x10] sm:$0xf]
        %v167 = vld [vmem:[%s156 + $0x14] sm:$0xf]
        %v168 = vld [vmem:[%s156 + $0x18] sm:$0xf]
        %v169 = vld [vmem:[%s156 + $0x1c] sm:$0xf]
        %v170 = vld [vmem:[%s156 + $0x20] sm:$0xf]
        %v171 = vld [vmem:[%s156 + $0x24] sm:$0xf]
        %v172 = vld [vmem:[%s156 + $0x28] sm:$0xf]
        %v173 = vld [vmem:[%s156 + $0x2c] sm:$0xf]
        %v174 = vld [vmem:[%s156 + $0x30] sm:$0xf]
        %v175 = vld [vmem:[%s156 + $0x34] sm:$0xf]
        %v176 = vld [vmem:[%s156 + $0x38] sm:$0xf]
        %v177 = vld [vmem:[%s156 + $0x3c] sm:$0xf]
        %v178 = vld [vmem:[%s156 + $0x40] sm:$0xf]
        %v179 = vld [vmem:[%s156 + $0x44] sm:$0xf]
        %v180 = vld [vmem:[%s156 + $0x48] sm:$0xf]
        %v181 = vld [vmem:[%s156 + $0x4c] sm:$0xf]
        %v182 = vld [vmem:[%s156 + $0x50] sm:$0xf]
        %v183 = vld [vmem:[%s156 + $0x54] sm:$0xf]
        %v184 = vld [vmem:[%s156 + $0x58] sm:$0xf]
        %v185 = vld [vmem:[%s156 + $0x5c] sm:$0xf]
        %v186 = vld [vmem:[%s156 + $0x60] sm:$0x3]
        %v187 = vunpack.c.l.bf16 %v162
        %v188 = vunpack.c.l.bf16 %v163
        %v189 = vunpack.c.l.bf16 %v164
        %v190 = vunpack.c.l.bf16 %v165
        %v191 = vunpack.c.l.bf16 %v166
        %v192 = vunpack.c.l.bf16 %v167
        %v193 = vunpack.c.l.bf16 %v168
        %v194 = vunpack.c.l.bf16 %v169
        %v195 = vunpack.c.l.bf16 %v170
        %v196 = vunpack.c.l.bf16 %v171
        %v197 = vunpack.c.l.bf16 %v172
        %v198 = vunpack.c.l.bf16 %v173
        %v199 = vunpack.c.l.bf16 %v174
        %v200 = vunpack.c.l.bf16 %v175
        %v201 = vunpack.c.l.bf16 %v176
        %v202 = vunpack.c.l.bf16 %v177
        %v203 = vunpack.c.l.bf16 %v178
        %v204 = vunpack.c.l.bf16 %v179
        %v205 = vunpack.c.l.bf16 %v180
        %v206 = vunpack.c.l.bf16 %v181
        %v207 = vunpack.c.l.bf16 %v182
        %v208 = vunpack.c.l.bf16 %v183
        %v209 = vunpack.c.l.bf16 %v184
        %v210 = vunpack.c.l.bf16 %v185
        %v211 = vunpack.c.l.bf16 %v186
        %v212 = vld [vmem:[%s161] sm:$0xff]
        %v213 = vld [vmem:[%s161 + $0x8] sm:$0xff]
        %v214 = vld [vmem:[%s161 + $0x10] sm:$0xff]
        %v215 = vld [vmem:[%s161 + $0x18] sm:$0xff]
        %v216 = vld [vmem:[%s161 + $0x20] sm:$0xff]
        %v217 = vld [vmem:[%s161 + $0x28] sm:$0xff]
        %v218 = vld [vmem:[%s161 + $0x30] sm:$0xff]
        %v219 = vld [vmem:[%s161 + $0x38] sm:$0xff]
        %v220 = vld [vmem:[%s161 + $0x40] sm:$0xff]
        %v221 = vld [vmem:[%s161 + $0x48] sm:$0xff]
        %v222 = vld [vmem:[%s161 + $0x50] sm:$0xff]
        %v223 = vld [vmem:[%s161 + $0x58] sm:$0xff]
        %v224 = vld [vmem:[%s161 + $0x60] sm:$0xff]
        %v225 = vld [vmem:[%s161 + $0x68] sm:$0xff]
        %v226 = vld [vmem:[%s161 + $0x70] sm:$0xff]
        %v227 = vld [vmem:[%s161 + $0x78] sm:$0xff]
        %v228 = vld [vmem:[%s161 + $0x80] sm:$0xff]
        %v229 = vld [vmem:[%s161 + $0x88] sm:$0xff]
        %v230 = vld [vmem:[%s161 + $0x90] sm:$0xff]
        %v231 = vld [vmem:[%s161 + $0x98] sm:$0xff]
        %v232 = vld [vmem:[%s161 + $0xa0] sm:$0xff]
        %v233 = vld [vmem:[%s161 + $0xa8] sm:$0xff]
        %v234 = vld [vmem:[%s161 + $0xb0] sm:$0xff]
        %v235 = vld [vmem:[%s161 + $0xb8] sm:$0xff]
        %v236 = vld [vmem:[%s161 + $0xc0] sm:$0xf]
        %237 = vmax.xlane.f32.xlu0 %v187
        %v238 = vpop.xlane.xlu0 %237
        %239 = vmax.xlane.f32.xlu0 %v188
        %v240 = vpop.xlane.xlu0 %239
        %241 = vmax.xlane.f32.xlu0 %v189
        %v242 = vpop.xlane.xlu0 %241
        %243 = vmax.xlane.f32.xlu0 %v190
        %v244 = vpop.xlane.xlu0 %243
        %245 = vmax.xlane.f32.xlu0 %v191
        %v246 = vpop.xlane.xlu0 %245
        %247 = vmax.xlane.f32.xlu0 %v192
        %v248 = vpop.xlane.xlu0 %247
        %249 = vmax.xlane.f32.xlu0 %v193
        %v250 = vpop.xlane.xlu0 %249
        %251 = vmax.xlane.f32.xlu0 %v194
        %v252 = vpop.xlane.xlu0 %251
        %253 = vmax.xlane.f32.xlu0 %v195
        %v254 = vpop.xlane.xlu0 %253
        %255 = vmax.xlane.f32.xlu0 %v196
        %v256 = vpop.xlane.xlu0 %255
        %257 = vmax.xlane.f32.xlu0 %v197
        %v258 = vpop.xlane.xlu0 %257
        %259 = vmax.xlane.f32.xlu0 %v198
        %v260 = vpop.xlane.xlu0 %259
        %261 = vmax.xlane.f32.xlu0 %v199
        %v262 = vpop.xlane.xlu0 %261
        %263 = vmax.xlane.f32.xlu0 %v200
        %v264 = vpop.xlane.xlu0 %263
        %265 = vmax.xlane.f32.xlu0 %v201
        %v266 = vpop.xlane.xlu0 %265
        %267 = vmax.xlane.f32.xlu0 %v202
        %v268 = vpop.xlane.xlu0 %267
        %269 = vmax.xlane.f32.xlu0 %v203
        %v270 = vpop.xlane.xlu0 %269
        %271 = vmax.xlane.f32.xlu0 %v204
        %v272 = vpop.xlane.xlu0 %271
        %273 = vmax.xlane.f32.xlu0 %v205
        %v274 = vpop.xlane.xlu0 %273
        %275 = vmax.xlane.f32.xlu0 %v206
        %v276 = vpop.xlane.xlu0 %275
        %277 = vmax.xlane.f32.xlu0 %v207
        %v278 = vpop.xlane.xlu0 %277
        %279 = vmax.xlane.f32.xlu0 %v208
        %v280 = vpop.xlane.xlu0 %279
        %281 = vmax.xlane.f32.xlu0 %v209
        %v282 = vpop.xlane.xlu0 %281
        %283 = vmax.xlane.f32.xlu0 %v210
        %v284 = vpop.xlane.xlu0 %283
        %vm285 = vcmask 1043456
        %v286 = vsel %vm285, %v211, -inf
        %287 = vmax.xlane.f32.xlu0 %v286
        %v288 = vpop.xlane.xlu0 %287
        %v289 = vsub.f32 %v187, %v238
        %v290 = vsub.f32 %v188, %v240
        %v291 = vsub.f32 %v189, %v242
        %v292 = vsub.f32 %v190, %v244
        %v293 = vsub.f32 %v191, %v246
        %v294 = vsub.f32 %v192, %v248
        %v295 = vsub.f32 %v193, %v250
        %v296 = vsub.f32 %v194, %v252
        %v297 = vsub.f32 %v195, %v254
        %v298 = vsub.f32 %v196, %v256
        %v299 = vsub.f32 %v197, %v258
        %v300 = vsub.f32 %v198, %v260
        %v301 = vsub.f32 %v199, %v262
        %v302 = vsub.f32 %v200, %v264
        %v303 = vsub.f32 %v201, %v266
        %v304 = vsub.f32 %v202, %v268
        %v305 = vsub.f32 %v203, %v270
        %v306 = vsub.f32 %v204, %v272
        %v307 = vsub.f32 %v205, %v274
        %v308 = vsub.f32 %v206, %v276
        %v309 = vsub.f32 %v207, %v278
        %v310 = vsub.f32 %v208, %v280
        %v311 = vsub.f32 %v209, %v282
        %v312 = vsub.f32 %v210, %v284
        %v313 = vsub.f32 %v211, %v288
        %v314 = vmul.f32 %v289, 1.442695
        %v315 = vpow.pop %v314
        %v316 = vmul.f32 %v290, 1.442695
        %v317 = vpow.pop %v316
        %v318 = vmul.f32 %v291, 1.442695
        %v319 = vpow.pop %v318
        %v320 = vmul.f32 %v292, 1.442695
        %v321 = vpow.pop %v320
        %v322 = vmul.f32 %v293, 1.442695
        %v323 = vpow.pop %v322
        %v324 = vmul.f32 %v294, 1.442695
        %v325 = vpow.pop %v324
        %v326 = vmul.f32 %v295, 1.442695
        %v327 = vpow.pop %v326
        %v328 = vmul.f32 %v296, 1.442695
        %v329 = vpow.pop %v328
        %v330 = vmul.f32 %v297, 1.442695
        %v331 = vpow.pop %v330
        %v332 = vmul.f32 %v298, 1.442695
        %v333 = vpow.pop %v332
        %v334 = vmul.f32 %v299, 1.442695
        %v335 = vpow.pop %v334
        %v336 = vmul.f32 %v300, 1.442695
        %v337 = vpow.pop %v336
        %v338 = vmul.f32 %v301, 1.442695
        %v339 = vpow.pop %v338
        %v340 = vmul.f32 %v302, 1.442695
        %v341 = vpow.pop %v340
        %v342 = vmul.f32 %v303, 1.442695
        %v343 = vpow.pop %v342
        %v344 = vmul.f32 %v304, 1.442695
        %v345 = vpow.pop %v344
        %v346 = vmul.f32 %v305, 1.442695
        %v347 = vpow.pop %v346
        %v348 = vmul.f32 %v306, 1.442695
        %v349 = vpow.pop %v348
        %v350 = vmul.f32 %v307, 1.442695
        %v351 = vpow.pop %v350
        %v352 = vmul.f32 %v308, 1.442695
        %v353 = vpow.pop %v352
        %v354 = vmul.f32 %v309, 1.442695
        %v355 = vpow.pop %v354
        %v356 = vmul.f32 %v310, 1.442695
        %v357 = vpow.pop %v356
        %v358 = vmul.f32 %v311, 1.442695
        %v359 = vpow.pop %v358
        %v360 = vmul.f32 %v312, 1.442695
        %v361 = vpow.pop %v360
        %v362 = vmul.f32 %v313, 1.442695
        %v363 = vpow.pop %v362
        %364 = vadd.xlane.f32.xlu0 %v315
        %v365 = vpop.xlane.xlu0 %364
        %366 = vadd.xlane.f32.xlu0 %v317
        %v367 = vpop.xlane.xlu0 %366
        %368 = vadd.xlane.f32.xlu0 %v319
        %v369 = vpop.xlane.xlu0 %368
        %370 = vadd.xlane.f32.xlu0 %v321
        %v371 = vpop.xlane.xlu0 %370
        %372 = vadd.xlane.f32.xlu0 %v323
        %v373 = vpop.xlane.xlu0 %372
        %374 = vadd.xlane.f32.xlu0 %v325
        %v375 = vpop.xlane.xlu0 %374
        %376 = vadd.xlane.f32.xlu0 %v327
        %v377 = vpop.xlane.xlu0 %376
        %378 = vadd.xlane.f32.xlu0 %v329
        %v379 = vpop.xlane.xlu0 %378
        %380 = vadd.xlane.f32.xlu0 %v331
        %v381 = vpop.xlane.xlu0 %380
        %382 = vadd.xlane.f32.xlu0 %v333
        %v383 = vpop.xlane.xlu0 %382
        %384 = vadd.xlane.f32.xlu0 %v335
        %v385 = vpop.xlane.xlu0 %384
        %386 = vadd.xlane.f32.xlu0 %v337
        %v387 = vpop.xlane.xlu0 %386
        %388 = vadd.xlane.f32.xlu0 %v339
        %v389 = vpop.xlane.xlu0 %388
        %390 = vadd.xlane.f32.xlu0 %v341
        %v391 = vpop.xlane.xlu0 %390
        %392 = vadd.xlane.f32.xlu0 %v343
        %v393 = vpop.xlane.xlu0 %392
        %394 = vadd.xlane.f32.xlu0 %v345
        %v395 = vpop.xlane.xlu0 %394
        %396 = vadd.xlane.f32.xlu0 %v347
        %v397 = vpop.xlane.xlu0 %396
        %398 = vadd.xlane.f32.xlu0 %v349
        %v399 = vpop.xlane.xlu0 %398
        %400 = vadd.xlane.f32.xlu0 %v351
        %v401 = vpop.xlane.xlu0 %400
        %402 = vadd.xlane.f32.xlu0 %v353
        %v403 = vpop.xlane.xlu0 %402
        %404 = vadd.xlane.f32.xlu0 %v355
        %v405 = vpop.xlane.xlu0 %404
        %406 = vadd.xlane.f32.xlu0 %v357
        %v407 = vpop.xlane.xlu0 %406
        %408 = vadd.xlane.f32.xlu0 %v359
        %v409 = vpop.xlane.xlu0 %408
        %410 = vadd.xlane.f32.xlu0 %v361
        %v411 = vpop.xlane.xlu0 %410
        %v412 = vsel %vm285, %v363, 0.0
        %413 = vadd.xlane.f32.xlu0 %v412
        %v414 = vpop.xlane.xlu0 %413
        %v415 = vrcp.pop %v365
        %v416 = vmul.f32 %v315, %v415
        %v417 = vrcp.pop %v367
        %v418 = vmul.f32 %v317, %v417
        %v419 = vrcp.pop %v369
        %v420 = vmul.f32 %v319, %v419
        %v421 = vrcp.pop %v371
        %v422 = vmul.f32 %v321, %v421
        %v423 = vrcp.pop %v373
        %v424 = vmul.f32 %v323, %v423
        %v425 = vrcp.pop %v375
        %v426 = vmul.f32 %v325, %v425
        %v427 = vrcp.pop %v377
        %v428 = vmul.f32 %v327, %v427
        %v429 = vrcp.pop %v379
        %v430 = vmul.f32 %v329, %v429
        %v431 = vrcp.pop %v381
        %v432 = vmul.f32 %v331, %v431
        %v433 = vrcp.pop %v383
        %v434 = vmul.f32 %v333, %v433
        %v435 = vrcp.pop %v385
        %v436 = vmul.f32 %v335, %v435
        %v437 = vrcp.pop %v387
        %v438 = vmul.f32 %v337, %v437
        %v439 = vrcp.pop %v389
        %v440 = vmul.f32 %v339, %v439
        %v441 = vrcp.pop %v391
        %v442 = vmul.f32 %v341, %v441
        %v443 = vrcp.pop %v393
        %v444 = vmul.f32 %v343, %v443
        %v445 = vrcp.pop %v395
        %v446 = vmul.f32 %v345, %v445
        %v447 = vrcp.pop %v397
        %v448 = vmul.f32 %v347, %v447
        %v449 = vrcp.pop %v399
        %v450 = vmul.f32 %v349, %v449
        %v451 = vrcp.pop %v401
        %v452 = vmul.f32 %v351, %v451
        %v453 = vrcp.pop %v403
        %v454 = vmul.f32 %v353, %v453
        %v455 = vrcp.pop %v405
        %v456 = vmul.f32 %v355, %v455
        %v457 = vrcp.pop %v407
        %v458 = vmul.f32 %v357, %v457
        %v459 = vrcp.pop %v409
        %v460 = vmul.f32 %v359, %v459
        %v461 = vrcp.pop %v411
        %v462 = vmul.f32 %v361, %v461
        %v463 = vrcp.pop %v414
        %v464 = vmul.f32 %v363, %v463
        %465 = vxpose.xlu0.b32.start [1/16] %v212, 128
        %466 = vxpose.xlu0.b32.cont [2/16] %v213, 128
        %467 = vxpose.xlu0.b32.cont [3/16] %v214, 128
        %468 = vxpose.xlu0.b32.cont [4/16] %v215, 128
        %469 = vxpose.xlu0.b32.cont [5/16] %v216, 128
        %470 = vxpose.xlu0.b32.cont [6/16] %v217, 128
        %471 = vxpose.xlu0.b32.cont [7/16] %v218, 128
        %472 = vxpose.xlu0.b32.cont [8/16] %v219, 128
        %473 = vxpose.xlu0.b32.cont [9/16] %v220, 128
        %474 = vxpose.xlu0.b32.cont [10/16] %v221, 128
        %475 = vxpose.xlu0.b32.cont [11/16] %v222, 128
        %476 = vxpose.xlu0.b32.cont [12/16] %v223, 128
        %477 = vxpose.xlu0.b32.cont [13/16] %v224, 128
        %478 = vxpose.xlu0.b32.cont [14/16] %v225, 128
        %479 = vxpose.xlu0.b32.cont [15/16] %v226, 128
        %480 = vxpose.xlu0.b32.end [16/16] %v227, 128
        %v481 = vpop.trf.xlu0
        %v482 = vpop.trf.xlu0
        %v483 = vpop.trf.xlu0
        %v484 = vpop.trf.xlu0
        %v485 = vpop.trf.xlu0
        %v486 = vpop.trf.xlu0
        %v487 = vpop.trf.xlu0
        %v488 = vpop.trf.xlu0
        %v489 = vpop.trf.xlu0
        %v490 = vpop.trf.xlu0
        %v491 = vpop.trf.xlu0
        %v492 = vpop.trf.xlu0
        %v493 = vpop.trf.xlu0
        %v494 = vpop.trf.xlu0
        %v495 = vpop.trf.xlu0
        %v496 = vpop.trf.xlu0
        %497 = vxpose.xlu0.b32.start [1/16] %v228, 128
        %498 = vxpose.xlu0.b32.cont [2/16] %v229, 128
        %499 = vxpose.xlu0.b32.cont [3/16] %v230, 128
        %500 = vxpose.xlu0.b32.cont [4/16] %v231, 128
        %501 = vxpose.xlu0.b32.cont [5/16] %v232, 128
        %502 = vxpose.xlu0.b32.cont [6/16] %v233, 128
        %503 = vxpose.xlu0.b32.cont [7/16] %v234, 128
        %504 = vxpose.xlu0.b32.cont [8/16] %v235, 128
        %505 = vxpose.xlu0.b32.cont [9/16] %v236, 128
        %506 = vxpose.xlu0.b32.cont [10/16] 0.0, 128
        %507 = vxpose.xlu0.b32.cont [11/16] 0.0, 128
        %508 = vxpose.xlu0.b32.cont [12/16] 0.0, 128
        %509 = vxpose.xlu0.b32.cont [13/16] 0.0, 128
        %510 = vxpose.xlu0.b32.cont [14/16] 0.0, 128
        %511 = vxpose.xlu0.b32.cont [15/16] 0.0, 128
        %512 = vxpose.xlu0.b32.end [16/16] 0.0, 128
        %v513 = vpop.trf.xlu0
        %v514 = vpop.trf.xlu0
        %v515 = vpop.trf.xlu0
        %v516 = vpop.trf.xlu0
        %v517 = vpop.trf.xlu0
        %v518 = vpop.trf.xlu0
        %v519 = vpop.trf.xlu0
        %v520 = vpop.trf.xlu0
        %v521 = vpop.trf.xlu0
        %v522 = vpop.trf.xlu0
        %v523 = vpop.trf.xlu0
        %v524 = vpop.trf.xlu0
        %v525 = vpop.trf.xlu0
        %v526 = vpop.trf.xlu0
        %v527 = vpop.trf.xlu0
        %v528 = vpop.trf.xlu0
        %vm529 = vcmask 556032
        %v531 = vsel %vm529, %v513, 0
        %v534 = vsel %vm529, %v514, 0
        %v537 = vsel %vm529, %v515, 0
        %v540 = vsel %vm529, %v516, 0
        %v543 = vsel %vm285, %v464, 0
        %545 = vmatprep.subr.mxu0 0.0
        %546 = vmatpush1.msra.mxu0 %v416
        %547 = vmatprep.subr.mxu0 0.0
        %548 = vmatpush1.msra.mxu0 %v418
        %549 = vmatprep.subr.mxu0 0.0
        %550 = vmatpush1.msra.mxu0 %v420
        %551 = vmatprep.subr.mxu0 0.0
        %552 = vmatpush1.msra.mxu0 %v422
        %553 = vmatprep.subr.mxu0 0.0
        %554 = vmatpush1.msra.mxu0 %v424
        %555 = vmatprep.subr.mxu0 0.0
        %556 = vmatpush1.msra.mxu0 %v426
        %557 = vmatprep.subr.mxu0 0.0
        %558 = vmatpush1.msra.mxu0 %v428
        %559 = vmatprep.subr.mxu0 0.0
        %560 = vmatpush1.msra.mxu0 %v430
        %561 = vmatprep.subr.mxu0 0.0
        %562 = vmatpush1.msra.mxu0 %v432
        %563 = vmatprep.subr.mxu0 0.0
        %564 = vmatpush1.msra.mxu0 %v434
        %565 = vmatprep.subr.mxu0 0.0
        %566 = vmatpush1.msra.mxu0 %v436
        %567 = vmatprep.subr.mxu0 0.0
        %568 = vmatpush1.msra.mxu0 %v438
        %569 = vmatprep.subr.mxu0 0.0
        %570 = vmatpush1.msra.mxu0 %v440
        %571 = vmatprep.subr.mxu0 0.0
        %572 = vmatpush1.msra.mxu0 %v442
        %573 = vmatprep.subr.mxu0 0.0
        %574 = vmatpush1.msra.mxu0 %v444
        %575 = vmatprep.subr.mxu0 0.0
        %576 = vmatpush1.msra.mxu0 %v446
        %577 = vmatprep.subr.mxu0 0.0
        %578 = vmatpush1.msra.mxu0 %v448
        %579 = vmatprep.subr.mxu0 0.0
        %580 = vmatpush1.msra.mxu0 %v450
        %581 = vmatprep.subr.mxu0 0.0
        %582 = vmatpush1.msra.mxu0 %v452
        %583 = vmatprep.subr.mxu0 0.0
        %584 = vmatpush1.msra.mxu0 %v454
        %585 = vmatprep.subr.mxu0 0.0
        %586 = vmatpush1.msra.mxu0 %v456
        %587 = vmatprep.subr.mxu0 0.0
        %588 = vmatpush1.msra.mxu0 %v458
        %589 = vmatprep.subr.mxu0 0.0
        %590 = vmatpush1.msra.mxu0 %v460
        %591 = vmatprep.subr.mxu0 0.0
        %592 = vmatpush1.msra.mxu0 %v462
        %593 = vmatprep.subr.mxu0 0.0
        %594 = vmatpush1.msra.mxu0 %v543
        %595 = vmatprep.subr.mxu0 0.0
        %596 = vmatpush1.msra.mxu0 0.0
        %597 = vmatprep.subr.mxu0 0.0
        %598 = vmatpush1.msra.mxu0 0.0
        %599 = vmatprep.subr.mxu0 0.0
        %600 = vmatpush1.msra.mxu0 0.0
        %601 = vmatprep.subr.mxu0 0.0
        %602 = vmatpush1.msra.mxu0 0.0
        %603 = vmatprep.subr.mxu0 0.0
        %604 = vmatpush1.msra.mxu0 0.0
        %605 = vmatprep.subr.mxu0 0.0
        %606 = vmatpush1.msra.mxu0 0.0
        %607 = vmatprep.subr.mxu0 0.0
        %608 = vmatpush1.msra.mxu0 0.0
        %609 = vmatprep.mubr.f32.mxu0 %v531
        %610 = vmatmul.mubr.f32.gmra.mrb[0].mxu0 %v481
        %v611 = vpop.f32.mrb[0].mxu0
        %v612 = vadd.f32 0.0, %v611
        %v613 = vpop.f32.mrb[0].mxu0
        %614 = vmatprep.mubr.f32.mxu0 %v534
        %615 = vmatmul.mubr.f32.gmra.mrb[0].mxu0 %v482
        %v616 = vpop.f32.mrb[0].mxu0
        %v617 = vadd.f32 0.0, %v616
        %v618 = vpop.f32.mrb[0].mxu0
        %619 = vmatprep.mubr.f32.mxu0 %v537
        %620 = vmatmul.mubr.f32.gmra.mrb[0].mxu0 %v483
        %v621 = vpop.f32.mrb[0].mxu0
        %v622 = vadd.f32 0.0, %v621
        %v623 = vpop.f32.mrb[0].mxu0
        %624 = vmatprep.mubr.f32.mxu0 %v540
        %625 = vmatmul.mubr.f32.gmra.mrb[0].mxu0 %v484
        %v626 = vpop.f32.mrb[0].mxu0
        %v627 = vadd.f32 0.0, %v626
        %v628 = vpop.f32.mrb[0].mxu0
        %629 = vdwg.mxu0
        %630 = vst [vmem:[%s151] sm:$0xff] %v612
        %631 = vst [vmem:[%s151 + $0x8] sm:$0xff] %v617
        %632 = vst [vmem:[%s151 + $0x10] sm:$0xff] %v622
        %633 = vst [vmem:[%s151 + $0x18] sm:$0xff] %v627
        %s634 = sand.u32 %s76, 1
        %s635 = scalar_lea.sflag [#allocation3], %s634
        %s636 = sand.u32 %s76, 1
        %s637 = smul.addr %s636, 32
        %s638 = scalar_lea.vmem [#allocation2], %s637
        // Predicated region
        $region29: #{tpu_custom_call.1} parent=27 // pred_check
          %p639 = pneg %p86
        $region30: #{tpu_custom_call.1} parent=27 // pred_check_branch
          %641 = sbr.rel (%p639) target = $region32
        $region31: #{tpu_custom_call.1} parent=27 // pred_region
          %s643 = ssub.s32 512, 512
          %644 = vsyncadd %s635, %s643
          %s645 = smul.addr %s16, 4
          %s646 = smul.addr %s645, 128
          %s647 = scalar_lea.hbm %s2, %s646
          %s648 = sshll.u32 %s638, 4
          %s649 = int_to_ptr.vmem [resolvable:$true] %s648
          %654 = dma.vmem_to_hbm [thread:$0]  %s649, 512, %s647, %s635, 128, 128, 8
        $region32: #{tpu_custom_call.1} parent=27 // pred_fallthru
          _
      $region28: #{tpu_custom_call.1} parent=5 // pred_fallthru
        _
      %p655 = scmp.le.s32.totalorder 2, %s11
      // Predicated region
      $region33: #{tpu_custom_call.1} parent=5 // pred_check
        %p656 = pneg %p655
      $region34: #{tpu_custom_call.1} parent=5 // pred_check_branch
        %658 = sbr.rel (%p656) target = $region36
      $region35: #{tpu_custom_call.1} parent=5 // pred_region
        %s659 = ssub.s32 %s11, 2
        // Predicated region
        $region37: #{tpu_custom_call.1} parent=35 // pred_check
          %p660 = pneg %p92
        $region38: #{tpu_custom_call.1} parent=35 // pred_check_branch
          %662 = sbr.rel (%p660) target = $region40
        $region39: #{tpu_custom_call.1} parent=35 // pred_region
          %s663 = sand.u32 %s77, 1
          %s664 = scalar_lea.sflag [#allocation3], %s663
          %s665 = sand.u32 %s77, 1
          %s666 = smul.addr %s665, 32
          %s667 = scalar_lea.vmem [#allocation2], %s666
          %668 = dma.done %s664, 512
        $region40: #{tpu_custom_call.1} parent=35 // pred_fallthru
          _
      $region36: #{tpu_custom_call.1} parent=5 // pred_fallthru
        _
    $region6: #{tpu_custom_call.1} parent=1 // loop_footer
      %s15 = sadd.s32 1, %s11
    $region7: #{tpu_custom_call.1} parent=1 // loop_footer_branch
      %10 = sbr.rel target = $region3
    $region8: #{tpu_custom_call.1} parent=1 // loop_exit
      _
    %669 = vsyncpa [#allocation3], 1
    %s670 = scalar_lea.sflag [#allocation3], 1
    %671 = vsyncpa %s670, 1

</llo_original>
